<compile_context>
chip_gen: v7x
topology: tpu7x:2x2x1
jax: 0.10.0
libtpu: 0.0.40
codegen_flags: <defaults>
</compile_context>

<pallas_src>
import jax
import jax.numpy as jnp
from jax.experimental import pallas as pl
from jax.experimental.pallas import tpu as pltpu


def _make_kernel(nch, nchunks):
    """Build the per-block kernel for a fixed chunk size / chunk count."""

    def _kernel(slope_ref, x_ref, o_ref):
        # Single learnable scalar in SMEM; fold the sign in once, outside the loop.
        neg_abs_slope = -jnp.abs(slope_ref[0])
        _, _, tr, lane = x_ref.shape
        off = 0
        # c1-major group loop: linear in nchunks (not quadratic in pairs).  For a
        # fixed c1 the c2 chunks form one contiguous channel slab, so the whole
        # group is one fused elementwise op over (reps*nch, tr, lane).
        for c1 in range(nchunks - 1):
            reps = nchunks - 1 - c1
            a = x_ref[0, c1 * nch:(c1 + 1) * nch, :, :]            # (nch, tr, lane)
            b = x_ref[0, (c1 + 1) * nch:nchunks * nch, :, :]       # (reps*nch, tr, lane)
            b4 = b.reshape(reps, nch, tr, lane)                    # leading-dim reshape: free
            res = jnp.exp(neg_abs_slope * jnp.abs(a[None] - b4))   # broadcast on leading dim
            o_ref[0, off:off + reps * nch, :, :] = (
                res.reshape(reps * nch, tr, lane).astype(o_ref.dtype))
            off += reps * nch

    return _kernel


def _choose_tiles(HW, C, out_c, itemsize, budget_bytes=8 << 20):
    """Factor H*W into (rows, lane) and pick a row tile within the VMEM budget.

    budget_bytes is the single-buffered (input + output) block size; doubled for
    the 2-deep pipeline it stays under the default scoped-VMEM limit on all
    generations (v7x included: 16 MiB << 32 MiB).
    """
    if HW % 128 == 0:
        lane = 128
    else:
        lane = HW  # TODO(synk): non-multiple-of-128 spatial sizes store lane-masked
    rows = HW // lane
    per_row_bytes = (C + out_c) * lane * itemsize
    max_rows = max(1, budget_bytes // per_row_bytes)
    tile_rows = rows  # default: whole image per grid step (max per-step work)
    if rows > max_rows:
        t = (max_rows // 8) * 8
        while t >= 8:
            if rows % t == 0:   # row tile must be a multiple of 8 (or the full extent)
                tile_rows = t
                break
            t -= 8
        # if no multiple-of-8 divisor fits, fall back to the full extent (legal).
    return lane, rows, tile_rows


def laplacian_pallas(x, slope, nch):
    """x: (N, C, H, W) float32, slope: (1,) float32, nch: channel chunk size."""
    N, C, H, W = x.shape
    assert C % nch == 0, "channel count must be a multiple of nch"
    nchunks = C // nch
    if nchunks < 2:
        raise ValueError("Laplacian needs at least two channel chunks (C // nch >= 2)")
    n_pairs = nchunks * (nchunks - 1) // 2
    out_c = n_pairs * nch
    HW = H * W

    lane, rows, tile_rows = _choose_tiles(HW, C, out_c, x.dtype.itemsize)
    # Contiguous view reshape (no data movement): spatial axis -> (rows, lane).
    x4 = x.reshape(N, C, rows, lane)

    # TODO(synk): the torch.no_grad() while-loop that re-randomizes self.epsilon and the
    # isnan/isinf + breakpoint() branch have no effect on the returned tensor, so they
    # are omitted.
    # TODO(synk): for very large nchunks the (out_c, tile_rows, lane) output block grows
    # quadratically; move pairs onto a grid axis (scalar-prefetched (c1,c2) table) then.
    kernel = _make_kernel(nch, nchunks)

    out4 = pl.pallas_call(
        kernel,
        out_shape=jax.ShapeDtypeStruct((N, out_c, rows, lane), x.dtype),
        grid=(N, rows // tile_rows),
        in_specs=[
            pl.BlockSpec(memory_space=pltpu.MemorySpace.SMEM),              # slope scalar
            pl.BlockSpec((1, C, tile_rows, lane), lambda i, r: (i, 0, r, 0)),
        ],
        out_specs=pl.BlockSpec((1, out_c, tile_rows, lane), lambda i, r: (i, 0, r, 0)),
        compiler_params=pltpu.CompilerParams(
            dimension_semantics=("parallel", "parallel")),
    )(slope, x4)

    return out4.reshape(N, out_c, H, W)


# ----------------------------- pure-JAX reference -------------------------------------
def laplacian_ref(x, slope, nch):
    nchunks = x.shape[1] // nch
    outs = []
    for c1 in range(nchunks - 1):
        for c2 in range(c1 + 1, nchunks):
            a = x[:, c1 * nch:(c1 + 1) * nch]
            b = x[:, c2 * nch:(c2 + 1) * nch]
            outs.append(jnp.exp(-jnp.abs(slope * (a - b))))
    return jnp.concatenate(outs, axis=1)


if __name__ == "__main__":
    key = jax.random.PRNGKey(0)
    k_x, k_s = jax.random.split(key)

    N, C, H, W = 2, 4, 16, 16
    x = jax.random.normal(k_x, (N, C, H, W), jnp.float32)
    slope = jax.random.normal(k_s, (1,), jnp.float32)   # the module's scalar Parameter

    # nch = 1 -> 4 chunks -> 6 pairs (matches the original test configuration)
    NCH = 1
    out = laplacian_pallas(x, slope, NCH)
    out = jax.block_until_ready(out)
    ref = laplacian_ref(x, slope[0], NCH)
    n_pairs = (C // NCH) * (C // NCH - 1) // 2
    assert out.shape == (N, n_pairs * NCH, H, W), out.shape
    err = float(jnp.max(jnp.abs(out - ref)))
    assert err < 1e-5, f"max abs err {err} (nch=1)"

    # nch = 2 -> 2 chunks -> 1 pair (exercises the nch > 1 path)
    NCH2 = 2
    out2 = jax.block_until_ready(laplacian_pallas(x, slope, NCH2))
    ref2 = laplacian_ref(x, slope[0], NCH2)
    err2 = float(jnp.max(jnp.abs(out2 - ref2)))
    assert out2.shape == ref2.shape, out2.shape
    assert err2 < 1e-5, f"max abs err {err2} (nch=2)"

    print("KERNEL_OK")
</pallas_src>

<mosaic_0001>
module attributes {stable_mosaic.version = 11 : i64} {
  func.func @_kernel(%arg0: i32, %arg1: i32, %arg2: memref<1xf32, #tpu.memory_space<smem>>, %arg3: memref<1x4x2x128xf32, #tpu.memory_space<vmem>>, %arg4: memref<1x6x2x128xf32, #tpu.memory_space<vmem>>) attributes {dimension_semantics = [#tpu.dimension_semantics<parallel>, #tpu.dimension_semantics<parallel>], iteration_bounds = array<i64: 2, 1>, scalar_prefetch = 0 : i64, scratch_operands = 0 : i64, tpu.core_type = #tpu.core_type<tc>, window_params = [{transform_indices = @transform_0, window_bounds = array<i64: 1>}, {transform_indices = @transform_1, window_bounds = array<i64: 1, 4, 2, 128>}, {transform_indices = @transform_2, window_bounds = array<i64: 1, 6, 2, 128>}]} {
    %c0 = arith.constant 0 : index
    %0 = memref.load %arg2[%c0] : memref<1xf32, #tpu.memory_space<smem>>
    %1 = math.absf %0 : f32
    %cst = arith.constant 0.000000e+00 : f32
    %2 = arith.subf %cst, %1 : f32
    %c0_0 = arith.constant 0 : index
    %c0_1 = arith.constant 0 : index
    %c0_2 = arith.constant 0 : index
    %c0_3 = arith.constant 0 : index
    %3 = vector.load %arg3[%c0_0, %c0_1, %c0_2, %c0_3] : memref<1x4x2x128xf32, #tpu.memory_space<vmem>>, vector<1x1x2x128xf32>
    %4 = vector.shape_cast %3 : vector<1x1x2x128xf32> to vector<1x2x128xf32>
    %c0_4 = arith.constant 0 : index
    %c1 = arith.constant 1 : index
    %c0_5 = arith.constant 0 : index
    %c0_6 = arith.constant 0 : index
    %5 = vector.load %arg3[%c0_4, %c1, %c0_5, %c0_6] : memref<1x4x2x128xf32, #tpu.memory_space<vmem>>, vector<1x3x2x128xf32>
    %6 = vector.shape_cast %5 : vector<1x3x2x128xf32> to vector<3x2x128xf32>
    %7 = vector.shape_cast %6 : vector<3x2x128xf32> to vector<3x1x2x128xf32>
    %8 = vector.shape_cast %4 : vector<1x2x128xf32> to vector<1x1x2x128xf32>
    %9 = vector.broadcast %8 : vector<1x1x2x128xf32> to vector<3x1x2x128xf32>
    %10 = arith.subf %9, %7 : vector<3x1x2x128xf32>
    %11 = math.absf %10 : vector<3x1x2x128xf32>
    %12 = vector.broadcast %2 : f32 to vector<3x1x2x128xf32>
    %13 = arith.mulf %12, %11 : vector<3x1x2x128xf32>
    %14 = math.exp %13 : vector<3x1x2x128xf32>
    %15 = vector.shape_cast %14 : vector<3x1x2x128xf32> to vector<3x2x128xf32>
    %c0_7 = arith.constant 0 : index
    %c0_8 = arith.constant 0 : index
    %c0_9 = arith.constant 0 : index
    %c0_10 = arith.constant 0 : index
    %16 = vector.load %arg4[%c0_7, %c0_8, %c0_9, %c0_10] : memref<1x6x2x128xf32, #tpu.memory_space<vmem>>, vector<1x3x2x128xf32>
    %17 = vector.shape_cast %16 : vector<1x3x2x128xf32> to vector<3x2x128xf32>
    %18 = vector.shape_cast %15 : vector<3x2x128xf32> to vector<1x3x2x128xf32>
    tpu.vector_store %arg4[%c0_7, %c0_8, %c0_9, %c0_10], %18 {strides = array<i32>} : memref<1x6x2x128xf32, #tpu.memory_space<vmem>>, vector<1x3x2x128xf32>,
    %c0_11 = arith.constant 0 : index
    %c1_12 = arith.constant 1 : index
    %c0_13 = arith.constant 0 : index
    %c0_14 = arith.constant 0 : index
    %19 = vector.load %arg3[%c0_11, %c1_12, %c0_13, %c0_14] : memref<1x4x2x128xf32, #tpu.memory_space<vmem>>, vector<1x1x2x128xf32>
    %20 = vector.shape_cast %19 : vector<1x1x2x128xf32> to vector<1x2x128xf32>
    %c0_15 = arith.constant 0 : index
    %c2 = arith.constant 2 : index
    %c0_16 = arith.constant 0 : index
    %c0_17 = arith.constant 0 : index
    %21 = vector.load %arg3[%c0_15, %c2, %c0_16, %c0_17] : memref<1x4x2x128xf32, #tpu.memory_space<vmem>>, vector<1x2x2x128xf32>
    %22 = vector.shape_cast %21 : vector<1x2x2x128xf32> to vector<2x2x128xf32>
    %23 = vector.shape_cast %22 : vector<2x2x128xf32> to vector<2x1x2x128xf32>
    %24 = vector.shape_cast %20 : vector<1x2x128xf32> to vector<1x1x2x128xf32>
    %25 = vector.broadcast %24 : vector<1x1x2x128xf32> to vector<2x1x2x128xf32>
    %26 = arith.subf %25, %23 : vector<2x1x2x128xf32>
    %27 = math.absf %26 : vector<2x1x2x128xf32>
    %28 = vector.broadcast %2 : f32 to vector<2x1x2x128xf32>
    %29 = arith.mulf %28, %27 : vector<2x1x2x128xf32>
    %30 = math.exp %29 : vector<2x1x2x128xf32>
    %31 = vector.shape_cast %30 : vector<2x1x2x128xf32> to vector<2x2x128xf32>
    %c0_18 = arith.constant 0 : index
    %c3 = arith.constant 3 : index
    %c0_19 = arith.constant 0 : index
    %c0_20 = arith.constant 0 : index
    %32 = vector.load %arg4[%c0_18, %c3, %c0_19, %c0_20] : memref<1x6x2x128xf32, #tpu.memory_space<vmem>>, vector<1x2x2x128xf32>
    %33 = vector.shape_cast %32 : vector<1x2x2x128xf32> to vector<2x2x128xf32>
    %34 = vector.shape_cast %31 : vector<2x2x128xf32> to vector<1x2x2x128xf32>
    tpu.vector_store %arg4[%c0_18, %c3, %c0_19, %c0_20], %34 {strides = array<i32>} : memref<1x6x2x128xf32, #tpu.memory_space<vmem>>, vector<1x2x2x128xf32>,
    %c0_21 = arith.constant 0 : index
    %c2_22 = arith.constant 2 : index
    %c0_23 = arith.constant 0 : index
    %c0_24 = arith.constant 0 : index
    %35 = vector.load %arg3[%c0_21, %c2_22, %c0_23, %c0_24] : memref<1x4x2x128xf32, #tpu.memory_space<vmem>>, vector<1x1x2x128xf32>
    %36 = vector.shape_cast %35 : vector<1x1x2x128xf32> to vector<1x2x128xf32>
    %c0_25 = arith.constant 0 : index
    %c3_26 = arith.constant 3 : index
    %c0_27 = arith.constant 0 : index
    %c0_28 = arith.constant 0 : index
    %37 = vector.load %arg3[%c0_25, %c3_26, %c0_27, %c0_28] : memref<1x4x2x128xf32, #tpu.memory_space<vmem>>, vector<1x1x2x128xf32>
    %38 = vector.shape_cast %37 : vector<1x1x2x128xf32> to vector<1x2x128xf32>
    %39 = vector.shape_cast %38 : vector<1x2x128xf32> to vector<1x1x2x128xf32>
    %40 = vector.shape_cast %36 : vector<1x2x128xf32> to vector<1x1x2x128xf32>
    %41 = arith.subf %40, %39 : vector<1x1x2x128xf32>
    %42 = math.absf %41 : vector<1x1x2x128xf32>
    %43 = vector.broadcast %2 : f32 to vector<1x1x2x128xf32>
    %44 = arith.mulf %43, %42 : vector<1x1x2x128xf32>
    %45 = math.exp %44 : vector<1x1x2x128xf32>
    %46 = vector.shape_cast %45 : vector<1x1x2x128xf32> to vector<1x2x128xf32>
    %c0_29 = arith.constant 0 : index
    %c5 = arith.constant 5 : index
    %c0_30 = arith.constant 0 : index
    %c0_31 = arith.constant 0 : index
    %47 = vector.load %arg4[%c0_29, %c5, %c0_30, %c0_31] : memref<1x6x2x128xf32, #tpu.memory_space<vmem>>, vector<1x1x2x128xf32>
    %48 = vector.shape_cast %47 : vector<1x1x2x128xf32> to vector<1x2x128xf32>
    %49 = vector.shape_cast %46 : vector<1x2x128xf32> to vector<1x1x2x128xf32>
    tpu.vector_store %arg4[%c0_29, %c5, %c0_30, %c0_31], %49 {strides = array<i32>} : memref<1x6x2x128xf32, #tpu.memory_space<vmem>>, vector<1x1x2x128xf32>,
    return
  }
  func.func @transform_0(%arg0: i32, %arg1: i32) -> i32 {
    %c0_i32 = arith.constant 0 : i32
    %c0_i32_0 = arith.constant 0 : i32
    return %c0_i32 : i32
  }
  func.func @transform_1(%arg0: i32, %arg1: i32) -> (i32, i32, i32, i32) {
    %c0_i32 = arith.constant 0 : i32
    %c0_i32_0 = arith.constant 0 : i32
    %c0_i32_1 = arith.constant 0 : i32
    return %arg0, %c0_i32, %arg1, %c0_i32_0 : i32, i32, i32, i32
  }
  func.func @transform_2(%arg0: i32, %arg1: i32) -> (i32, i32, i32, i32) {
    %c0_i32 = arith.constant 0 : i32
    %c0_i32_0 = arith.constant 0 : i32
    %c0_i32_1 = arith.constant 0 : i32
    return %arg0, %c0_i32, %arg1, %c0_i32_0 : i32, i32, i32, i32
  }
}

</mosaic_0001>

<llo_original>
// kernel: tpu_custom_call.1
$region0: #{tpu_custom_call.1}
  #allocation0 [shape = 'u32[]', space=smem, size = 0x4, offset = 0x4, fixed_abs, tag = 'smem constant byte address 0x4 - core index']
  #allocation1 [shape = 'u32[144,128]{1,0:T(1,128)}', space=vmem, size = 0x12000, scoped, tag = 'internal scratch']
  #allocation2 [shape = 'f32[1]{0:T(128)S(6)}', space=smem, size = 0x200, scoped, tag = 'scoped memory for tpu_custom_call.1']
  %s0 = inlined_call_operand.<no memory space> [shape: f32[1], index: 0, kind: input, shape index: {}]
  %s1 = inlined_call_operand.hbm [shape: f32[2,4,2,128], index: 1, kind: input, shape index: {}]
  %s2 = inlined_call_operand.hbm [shape: f32[2,6,2,128], index: 2, kind: output, shape index: {}]
  %s3 = sld [smem:[#allocation0]]
  $region45: #{tpu_custom_call.1} parent=0
    _
  %s5 = ssub.s32 1, %s3
  %s6 = scalar_select 0, %s5, %s3
  %7 = sst [smem:[#allocation2]] %s0
  $region1: #{tpu_custom_call.1} parent=0
    #allocation3 [shape = 'u8[8192]{0}', space=vmem, size = 0x2000, scoped, tag = 'input window, operand 1']
    #allocation4 [shape = 's32[2]{0}', space=sflag, size = 0x8, scoped, tag = 'scoped memory for tpu_custom_call.1']
    #allocation5 [shape = 's32[2]{0}', space=sflag, size = 0x8, scoped, tag = 'scoped memory for tpu_custom_call.1']
    #allocation6 [shape = 'u8[12288]{0}', space=vmem, size = 0x3000, scoped, tag = 'output window, operand 0']
    %8 = vsyncpa [#allocation4], 0
    %s9 = scalar_lea.sflag [#allocation4], 1
    %10 = vsyncpa %s9, 0
    %11 = vsyncpa [#allocation5], 0
    %s12 = scalar_lea.sflag [#allocation5], 1
    %13 = vsyncpa %s12, 0
    loop: start=0, step=1, limit=4
    $region2: #{tpu_custom_call.1} parent=1 // loop_pre_header
      _
    $region3: #{tpu_custom_call.1} parent=1 // loop_header
      %s15 = sphi 0, %s19
      %p16 = scmp.ge.s32.totalorder %s15, 4
      %s22 = sphi 0, %s34
      %s23 = sphi 0, %s30
      %s24 = sphi 0, %s22
      %s25 = sphi 0, %s23
      %s26 = sphi 0, %s24
      %s27 = sphi 0, %s25
      %s35 = sphi 0, %s35
      %s37 = sphi 0, %s35
      %s38 = sphi 0, %s37
      %s52 = sphi 0, %s38
      %s60 = sphi 0, %s62
      %s63 = sphi 0, %s60
      %s64 = sphi 0, %s63
      %s80 = sphi 0, %s64
      %s88 = sphi 0, %s90
      %s91 = sphi 0, %s88
      %s92 = sphi 0, %s91
      %s108 = sphi 0, %s92
    $region4: #{tpu_custom_call.1} parent=1 // loop_header_branch
      %18 = sbr.rel (%p16) target = $region8
    $region5: #{tpu_custom_call.1} parent=1 // loop_body
      %s20 = ssub.s32 %s15, 1
      %s21 = ssub.s32 %s15, 2
      %s28 = sadd.s32 1, %s23
      %p29 = scmp.ge.s32.totalorder %s28, 1
      %s30 = scalar_select %p29, 0, %s28
      %s31 = sadd.s32 1, %s22
      %s32 = scalar_select %p29, %s31, %s22
      %p33 = scmp.ge.s32.totalorder %s32, 2
      %s34 = scalar_select %p33, 0, %s32
      %s36 = sadd.s32 %s35, 1
      %p39 = scmp.eq.s32.totalorder %s15, 1
      %p40 = scmp.ne.s32.totalorder %s35, %s37
      %p41 = scmp.eq.s32.totalorder %s15, 0
      %p42 = por %p40, %p41
      %p43 = scmp.ne.s32.totalorder %s35, %s37
      %p44 = scmp.eq.s32.totalorder %s20, 1
      %p45 = por %p43, %p44
      %p46 = scmp.ne.s32.totalorder %s37, %s38
      %p47 = scmp.eq.s32.totalorder %s20, 0
      %p48 = por %p46, %p47
      %p49 = scmp.ne.s32.totalorder %s37, %s38
      %p50 = scmp.eq.s32.totalorder %s21, 1
      %p51 = por %p49, %p50
      %p53 = scmp.ne.s32.totalorder %s38, %s52
      %p54 = scmp.eq.s32.totalorder %s21, 0
      %p55 = por %p53, %p54
      %s56 = ssub.s32 %s22, %s34
      %s57 = ssub.s32 %s23, %s30
      %s58 = sor.u32 %s56, %s57
      %p59 = scmp.eq.s32.totalorder %s58, 0
      %s61 = sadd.s32 %s60, 1
      %s62 = scalar_select %p59, %s60, %s61
      %p65 = pneg %p59
      %p66 = scmp.eq.s32.totalorder %s15, 1
      %p67 = por %p65, %p66
      %p68 = scmp.ne.s32.totalorder %s60, %s63
      %p69 = scmp.eq.s32.totalorder %s15, 0
      %p70 = por %p68, %p69
      %p71 = scmp.ne.s32.totalorder %s60, %s63
      %p72 = scmp.eq.s32.totalorder %s20, 1
      %p73 = por %p71, %p72
      %p74 = scmp.ne.s32.totalorder %s63, %s64
      %p75 = scmp.eq.s32.totalorder %s20, 0
      %p76 = por %p74, %p75
      %p77 = scmp.ne.s32.totalorder %s63, %s64
      %p78 = scmp.eq.s32.totalorder %s21, 1
      %p79 = por %p77, %p78
      %p81 = scmp.ne.s32.totalorder %s64, %s80
      %p82 = scmp.eq.s32.totalorder %s21, 0
      %p83 = por %p81, %p82
      %s84 = ssub.s32 %s22, %s34
      %s85 = ssub.s32 %s23, %s30
      %s86 = sor.u32 %s84, %s85
      %p87 = scmp.eq.s32.totalorder %s86, 0
      %s89 = sadd.s32 %s88, 1
      %s90 = scalar_select %p87, %s88, %s89
      %p93 = pneg %p87
      %p94 = scmp.eq.s32.totalorder %s15, 1
      %p95 = por %p93, %p94
      %p96 = scmp.ne.s32.totalorder %s88, %s91
      %p97 = scmp.eq.s32.totalorder %s15, 0
      %p98 = por %p96, %p97
      %p99 = scmp.ne.s32.totalorder %s88, %s91
      %p100 = scmp.eq.s32.totalorder %s20, 1
      %p101 = por %p99, %p100
      %p102 = scmp.ne.s32.totalorder %s91, %s92
      %p103 = scmp.eq.s32.totalorder %s20, 0
      %p104 = por %p102, %p103
      %p105 = scmp.ne.s32.totalorder %s91, %s92
      %p106 = scmp.eq.s32.totalorder %s21, 1
      %p107 = por %p105, %p106
      %p109 = scmp.ne.s32.totalorder %s92, %s108
      %p110 = scmp.eq.s32.totalorder %s21, 0
      %p111 = por %p109, %p110
      %p112 = scmp.le.s32.totalorder 1, %s15
      %p113 = scmp.lt.s32.totalorder %s15, 3
      %p114 = pnand %p112, %p113
      %p115 = pneg %p114
      // Predicated region
      $region9: #{tpu_custom_call.1} parent=5 // pred_check
        _
      $region10: #{tpu_custom_call.1} parent=5 // pred_check_branch
        %117 = sbr.rel (%p114) target = $region12
      $region11: #{tpu_custom_call.1} parent=5 // pred_region
        %s118 = ssub.s32 %s15, 1
        // Predicated region
        $region13: #{tpu_custom_call.1} parent=11 // pred_check
          %p119 = pneg %p48
        $region14: #{tpu_custom_call.1} parent=11 // pred_check_branch
          %121 = sbr.rel (%p119) target = $region16
        $region15: #{tpu_custom_call.1} parent=11 // pred_region
          _
        $region16: #{tpu_custom_call.1} parent=11 // pred_fallthru
          _
      $region12: #{tpu_custom_call.1} parent=5 // pred_fallthru
        _
      %p122 = scmp.lt.s32.totalorder %s15, 2
      // Predicated region
      $region17: #{tpu_custom_call.1} parent=5 // pred_check
        %p123 = pneg %p122
      $region18: #{tpu_custom_call.1} parent=5 // pred_check_branch
        %125 = sbr.rel (%p123) target = $region20
      $region19: #{tpu_custom_call.1} parent=5 // pred_region
        // Predicated region
        $region21: #{tpu_custom_call.1} parent=19 // pred_check
          %p126 = pneg %p70
        $region22: #{tpu_custom_call.1} parent=19 // pred_check_branch
          %128 = sbr.rel (%p126) target = $region24
        $region23: #{tpu_custom_call.1} parent=19 // pred_region
          %s129 = sand.u32 %s60, 1
          %s130 = scalar_lea.sflag [#allocation4], %s129
          %s131 = sand.u32 %s60, 1
          %s132 = smul.addr %s131, 8
          %s133 = scalar_lea.vmem [#allocation3], %s132
          %s135 = ssub.s32 128, 128
          %136 = vsyncadd %s130, %s135
          %s137 = smul.addr %s22, 4
          %s138 = sadd.s32 %s23, %s137
          %s139 = smul.addr %s138, 32
          %s140 = scalar_lea.hbm %s1, %s139
          %s141 = sshll.u32 %s133, 4
          %s142 = int_to_ptr.vmem [resolvable:$true] %s141
          %147 = dma.hbm_to_vmem [thread:$0]  %s140, 128, %s142, %s130, 32, 32, 2
        $region24: #{tpu_custom_call.1} parent=19 // pred_fallthru
          _
      $region20: #{tpu_custom_call.1} parent=5 // pred_fallthru
        _
      %p148 = scmp.le.s32.totalorder 1, %s15
      %p149 = scmp.lt.s32.totalorder %s15, 3
      %p150 = pnand %p148, %p149
      %p151 = pneg %p150
      // Predicated region
      $region25: #{tpu_custom_call.1} parent=5 // pred_check
        _
      $region26: #{tpu_custom_call.1} parent=5 // pred_check_branch
        %153 = sbr.rel (%p150) target = $region28
      $region27: #{tpu_custom_call.1} parent=5 // pred_region
        %s154 = ssub.s32 %s15, 1
        %s155 = sand.u32 %s63, 1
        %s156 = scalar_lea.sflag [#allocation4], %s155
        %s157 = sand.u32 %s63, 1
        %s158 = smul.addr %s157, 8
        %s159 = scalar_lea.vmem [#allocation3], %s158
        // Predicated region
        $region29: #{tpu_custom_call.1} parent=27 // pred_check
          %p160 = pneg %p76
        $region30: #{tpu_custom_call.1} parent=27 // pred_check_branch
          %162 = sbr.rel (%p160) target = $region32
        $region31: #{tpu_custom_call.1} parent=27 // pred_region
          %163 = dma.done %s156, 128
        $region32: #{tpu_custom_call.1} parent=27 // pred_fallthru
          _
        %p164 = pneg %p48
        %p165 = pneg %p45
        %s166 = sand.u32 %s63, 1
        %s167 = scalar_lea.sflag [#allocation4], %s166
        %s168 = sand.u32 %s63, 1
        %s169 = smul.addr %s168, 8
        %s170 = scalar_lea.vmem [#allocation3], %s169
        %p171 = pneg %p76
        %p172 = pneg %p73
        %p173 = pneg %p104
        %p174 = pneg %p101
        %s175 = sand.u32 %s91, 1
        %s176 = scalar_lea.sflag [#allocation5], %s175
        %s177 = sand.u32 %s91, 1
        %s178 = smul.addr %s177, 12
        %s179 = scalar_lea.vmem [#allocation6], %s178
        %s180 = sld [smem:[#allocation2]]
        %s181 = sand.u32 2147483647, %s180
        %s182 = ssub.f32 0.0, %s181
        %v183 = vld [vmem:[%s159] sm:$0x3]
        %s184 = scalar_lea.vmem %s159, 2 [#allocation3]
        %v185 = vld [vmem:[%s184] sm:$0x3]
        %v186 = vld [vmem:[%s184 + $0x2] sm:$0x3]
        %v187 = vld [vmem:[%s184 + $0x4] sm:$0x3]
        %v188 = vsub.f32 %v183, %v185
        %v189 = vsub.f32 %v183, %v186
        %v190 = vsub.f32 %v183, %v187
        %v191 = vand.u32 2147483647, %v188
        %v192 = vand.u32 2147483647, %v189
        %v193 = vand.u32 2147483647, %v190
        %v194 = vstv %s182
        %v195 = vmul.f32 %v194, %v191
        %v196 = vmul.f32 %v194, %v192
        %v197 = vmul.f32 %v194, %v193
        %v198 = vmul.f32 %v195, 1.442695
        %v199 = vpow.pop %v198
        %v200 = vmul.f32 %v196, 1.442695
        %v201 = vpow.pop %v200
        %v202 = vmul.f32 %v197, 1.442695
        %v203 = vpow.pop %v202
        %204 = vst [vmem:[%s179] sm:$0x3] %v199
        %205 = vst [vmem:[%s179 + $0x2] sm:$0x3] %v201
        %206 = vst [vmem:[%s179 + $0x4] sm:$0x3] %v203
        %v207 = vld [vmem:[%s184] sm:$0x3]
        %s208 = scalar_lea.vmem %s159, 4 [#allocation3]
        %v209 = vld [vmem:[%s208] sm:$0x3]
        %v210 = vld [vmem:[%s208 + $0x2] sm:$0x3]
        %v211 = vsub.f32 %v207, %v209
        %v212 = vsub.f32 %v207, %v210
        %v213 = vand.u32 2147483647, %v211
        %v214 = vand.u32 2147483647, %v212
        %v215 = vmul.f32 %v194, %v213
        %v216 = vmul.f32 %v194, %v214
        %v217 = vmul.f32 %v215, 1.442695
        %v218 = vpow.pop %v217
        %v219 = vmul.f32 %v216, 1.442695
        %v220 = vpow.pop %v219
        %s221 = scalar_lea.vmem %s179, 6 [#allocation6]
        %222 = vst [vmem:[%s221] sm:$0x3] %v218
        %223 = vst [vmem:[%s221 + $0x2] sm:$0x3] %v220
        %v224 = vld [vmem:[%s208] sm:$0x3]
        %s225 = scalar_lea.vmem %s159, 6 [#allocation3]
        %v226 = vld [vmem:[%s225] sm:$0x3]
        %v227 = vsub.f32 %v224, %v226
        %v228 = vand.u32 2147483647, %v227
        %v229 = vmul.f32 %v194, %v228
        %v230 = vmul.f32 %v229, 1.442695
        %v231 = vpow.pop %v230
        %s232 = scalar_lea.vmem %s179, 10 [#allocation6]
        %233 = vst [vmem:[%s232] sm:$0x3] %v231
        %s234 = sand.u32 %s91, 1
        %s235 = scalar_lea.sflag [#allocation5], %s234
        %s236 = sand.u32 %s91, 1
        %s237 = smul.addr %s236, 12
        %s238 = scalar_lea.vmem [#allocation6], %s237
        // Predicated region
        $region33: #{tpu_custom_call.1} parent=27 // pred_check
          %p239 = pneg %p101
        $region34: #{tpu_custom_call.1} parent=27 // pred_check_branch
          %241 = sbr.rel (%p239) target = $region36
        $region35: #{tpu_custom_call.1} parent=27 // pred_region
          %s243 = ssub.s32 192, 192
          %244 = vsyncadd %s235, %s243
          %s245 = smul.addr %s24, 6
          %s246 = sadd.s32 %s25, %s245
          %s247 = smul.addr %s246, 32
          %s248 = scalar_lea.hbm %s2, %s247
          %s249 = sshll.u32 %s238, 4
          %s250 = int_to_ptr.vmem [resolvable:$true] %s249
          %255 = dma.vmem_to_hbm [thread:$0]  %s250, 192, %s248, %s235, 32, 32, 2
        $region36: #{tpu_custom_call.1} parent=27 // pred_fallthru
          _
      $region28: #{tpu_custom_call.1} parent=5 // pred_fallthru
        _
      %p256 = scmp.le.s32.totalorder 2, %s15
      // Predicated region
      $region37: #{tpu_custom_call.1} parent=5 // pred_check
        %p257 = pneg %p256
      $region38: #{tpu_custom_call.1} parent=5 // pred_check_branch
        %259 = sbr.rel (%p257) target = $region40
      $region39: #{tpu_custom_call.1} parent=5 // pred_region
        %s260 = ssub.s32 %s15, 2
        // Predicated region
        $region41: #{tpu_custom_call.1} parent=39 // pred_check
          %p261 = pneg %p107
        $region42: #{tpu_custom_call.1} parent=39 // pred_check_branch
          %263 = sbr.rel (%p261) target = $region44
        $region43: #{tpu_custom_call.1} parent=39 // pred_region
          %s264 = sand.u32 %s92, 1
          %s265 = scalar_lea.sflag [#allocation5], %s264
          %s266 = sand.u32 %s92, 1
          %s267 = smul.addr %s266, 12
          %s268 = scalar_lea.vmem [#allocation6], %s267
          %269 = dma.done %s265, 192
        $region44: #{tpu_custom_call.1} parent=39 // pred_fallthru
          _
      $region40: #{tpu_custom_call.1} parent=5 // pred_fallthru
        _
    $region6: #{tpu_custom_call.1} parent=1 // loop_footer
      %s19 = sadd.s32 1, %s15
    $region7: #{tpu_custom_call.1} parent=1 // loop_footer_branch
      %14 = sbr.rel target = $region3
    $region8: #{tpu_custom_call.1} parent=1 // loop_exit
      _
    %270 = vsyncpa [#allocation4], 1
    %s271 = scalar_lea.sflag [#allocation4], 1
    %272 = vsyncpa %s271, 1
    %273 = vsyncpa [#allocation5], 1
    %s274 = scalar_lea.sflag [#allocation5], 1
    %275 = vsyncpa %s274, 1

</llo_original>
